<compile_context>
chip_gen: v7x
topology: tpu7x:2x2x1
jax: 0.10.0
libtpu: 0.0.40
codegen_flags: <defaults>
</compile_context>

<pallas_src>
import functools

import jax
import jax.numpy as jnp
from jax.experimental import pallas as pl
from jax.experimental.pallas import tpu as pltpu


def _embedding_kernel(patch_ref, cls_ref, pos_ref, out_ref):
    """Fused concat(class_token, patches) + positional_embedding.

    patch_ref: (bb, N,   D) VMEM  flattened image patches
    cls_ref:   (bb, 1,   D) VMEM  learnable class token
    pos_ref:   (bb, N+1, D) VMEM  positional embedding
    out_ref:   (bb, N+1, D) VMEM  output tile
    """
    # Row 0 of every sequence: class token + pos[0].
    out_ref[:, :1, :] = cls_ref[...] + pos_ref[:, :1, :]
    # Rows 1..N: patches + pos[1..N] (the +1 sublane offset of the store is
    # a cheap per-vreg relayout, hidden under the HBM-bound DMA).
    out_ref[:, 1:, :] = patch_ref[...] + pos_ref[:, 1:, :]


def _pick_block_batch(batch, n_patches, dim, itemsize, budget_bytes=16 << 20):
    """Images per grid step: biggest bb dividing `batch` whose double-buffered
    VMEM footprint stays under `budget_bytes`, keeping grid length >= 2 when
    possible (v7x has 2 TensorCores)."""
    # double-buffered: patches 2*N*D + cls 2*D + pos 2*(N+1)*D + out 2*(N+1)*D
    per_image = (6 * n_patches + 6) * dim * itemsize
    bb = max(1, int(budget_bytes // max(per_image, 1)))
    if batch >= 2:
        bb = min(bb, batch // 2)
    bb = max(1, min(bb, batch))
    while batch % bb:
        bb -= 1
    return bb


@functools.partial(jax.jit, static_argnames=("patch_size",))
def vit_raw_embedding(x, class_token, positional_embedding, *, patch_size):
    """x: (B, C, H, W) float32 (NCHW, like PyTorch). Returns (B, N+1, C*P*P)."""
    B, C, H, W = x.shape
    P = patch_size
    assert H == W and H % P == 0
    n_side = H // P
    N = n_side * n_side
    D = C * P * P
    assert class_token.shape == (B, 1, D)
    assert positional_embedding.shape == (B, N + 1, D)

    # Patch extraction (torch unfold/permute/view equivalent) — layout only.
    # (B,C,H,W) -> (B,C,H/P,P,W/P,P) -> (B,H/P,W/P,C,P,P) -> (B,N,D)
    patches = x.reshape(B, C, n_side, P, n_side, P)
    patches = jnp.transpose(patches, (0, 2, 4, 1, 3, 5))
    patches = patches.reshape(B, N, D)

    bb = _pick_block_batch(B, N, D, jnp.dtype(x.dtype).itemsize)

    return pl.pallas_call(
        _embedding_kernel,
        out_shape=jax.ShapeDtypeStruct((B, N + 1, D), x.dtype),
        grid=(B // bb,),
        in_specs=[
            pl.BlockSpec((bb, N, D), lambda i: (i, 0, 0)),
            pl.BlockSpec((bb, 1, D), lambda i: (i, 0, 0)),
            pl.BlockSpec((bb, N + 1, D), lambda i: (i, 0, 0)),
        ],
        out_specs=pl.BlockSpec((bb, N + 1, D), lambda i: (i, 0, 0)),
        compiler_params=pltpu.CompilerParams(
            dimension_semantics=("parallel",),
            allow_input_fusion=[True, False, False],
            vmem_limit_bytes=32 * 1024 * 1024,
        ),
    )(patches, class_token, positional_embedding)


if __name__ == "__main__":
    # Small shapes consistent with the module: embedding_dim == C * P * P.
    batch_size = 2
    num_channels = 2
    image_size = 16
    patch_size = 8
    embedding_dim = num_channels * patch_size * patch_size  # 128 (lane-dense)
    num_patches = (image_size // patch_size) ** 2            # 4

    key = jax.random.PRNGKey(0)
    k_x, k_cls, k_pos = jax.random.split(key, 3)

    x = jax.random.normal(
        k_x, (batch_size, num_channels, image_size, image_size), jnp.float32
    )
    class_token = jax.random.normal(
        k_cls, (batch_size, 1, embedding_dim), jnp.float32
    )
    positional_embedding = jax.random.normal(
        k_pos, (batch_size, num_patches + 1, embedding_dim), jnp.float32
    )

    out = vit_raw_embedding(
        x, class_token, positional_embedding, patch_size=patch_size
    )
    out = jax.block_until_ready(out)

    # Pure-JAX reference for correctness.
    n_side = image_size // patch_size
    ref = x.reshape(batch_size, num_channels, n_side, patch_size, n_side, patch_size)
    ref = jnp.transpose(ref, (0, 2, 4, 1, 3, 5)).reshape(
        batch_size, num_patches, embedding_dim
    )
    ref = jnp.concatenate([class_token, ref], axis=1) + positional_embedding

    assert out.shape == (batch_size, num_patches + 1, embedding_dim)
    assert jnp.allclose(out, ref, atol=1e-6), "mismatch vs reference"
    print("KERNEL_OK")
</pallas_src>

<mosaic_0001>
module attributes {stable_mosaic.version = 11 : i64} {
  func.func @_embedding_kernel(%arg0: i32, %arg1: memref<1x4x128xf32, #tpu.memory_space<vmem>>, %arg2: memref<1x1x128xf32, #tpu.memory_space<vmem>>, %arg3: memref<1x5x128xf32, #tpu.memory_space<vmem>>, %arg4: memref<1x5x128xf32, #tpu.memory_space<vmem>>) attributes {dimension_semantics = [#tpu.dimension_semantics<parallel>], iteration_bounds = array<i64: 2>, scalar_prefetch = 0 : i64, scratch_operands = 0 : i64, tpu.core_type = #tpu.core_type<tc>, window_params = [{transform_indices = @transform_0, window_bounds = array<i64: 1, 4, 128>}, {transform_indices = @transform_1, window_bounds = array<i64: 1, 1, 128>}, {transform_indices = @transform_2, window_bounds = array<i64: 1, 5, 128>}, {transform_indices = @transform_3, window_bounds = array<i64: 1, 5, 128>}]} {
    %c0 = arith.constant 0 : index
    %c0_0 = arith.constant 0 : index
    %c0_1 = arith.constant 0 : index
    %0 = vector.load %arg2[%c0, %c0_0, %c0_1] : memref<1x1x128xf32, #tpu.memory_space<vmem>>, vector<1x1x128xf32>
    %c0_2 = arith.constant 0 : index
    %c0_3 = arith.constant 0 : index
    %c0_4 = arith.constant 0 : index
    %1 = vector.load %arg3[%c0_2, %c0_3, %c0_4] : memref<1x5x128xf32, #tpu.memory_space<vmem>>, vector<1x1x128xf32>
    %2 = arith.addf %0, %1 : vector<1x1x128xf32>
    %c0_5 = arith.constant 0 : index
    %c0_6 = arith.constant 0 : index
    %c0_7 = arith.constant 0 : index
    %3 = vector.load %arg4[%c0_5, %c0_6, %c0_7] : memref<1x5x128xf32, #tpu.memory_space<vmem>>, vector<1x1x128xf32>
    tpu.vector_store %arg4[%c0_5, %c0_6, %c0_7], %2 {strides = array<i32>} : memref<1x5x128xf32, #tpu.memory_space<vmem>>, vector<1x1x128xf32>,
    %c0_8 = arith.constant 0 : index
    %c0_9 = arith.constant 0 : index
    %c0_10 = arith.constant 0 : index
    %4 = vector.load %arg1[%c0_8, %c0_9, %c0_10] : memref<1x4x128xf32, #tpu.memory_space<vmem>>, vector<1x4x128xf32>
    %c0_11 = arith.constant 0 : index
    %c1 = arith.constant 1 : index
    %c0_12 = arith.constant 0 : index
    %5 = vector.load %arg3[%c0_11, %c1, %c0_12] : memref<1x5x128xf32, #tpu.memory_space<vmem>>, vector<1x4x128xf32>
    %6 = arith.addf %4, %5 : vector<1x4x128xf32>
    %c0_13 = arith.constant 0 : index
    %c1_14 = arith.constant 1 : index
    %c0_15 = arith.constant 0 : index
    %7 = vector.load %arg4[%c0_13, %c1_14, %c0_15] : memref<1x5x128xf32, #tpu.memory_space<vmem>>, vector<1x4x128xf32>
    tpu.vector_store %arg4[%c0_13, %c1_14, %c0_15], %6 {strides = array<i32>} : memref<1x5x128xf32, #tpu.memory_space<vmem>>, vector<1x4x128xf32>,
    return
  }
  func.func @transform_0(%arg0: i32) -> (i32, i32, i32) {
    %c0_i32 = arith.constant 0 : i32
    %c0_i32_0 = arith.constant 0 : i32
    %c0_i32_1 = arith.constant 0 : i32
    return %arg0, %c0_i32, %c0_i32_0 : i32, i32, i32
  }
  func.func @transform_1(%arg0: i32) -> (i32, i32, i32) {
    %c0_i32 = arith.constant 0 : i32
    %c0_i32_0 = arith.constant 0 : i32
    %c0_i32_1 = arith.constant 0 : i32
    return %arg0, %c0_i32, %c0_i32_0 : i32, i32, i32
  }
  func.func @transform_2(%arg0: i32) -> (i32, i32, i32) {
    %c0_i32 = arith.constant 0 : i32
    %c0_i32_0 = arith.constant 0 : i32
    %c0_i32_1 = arith.constant 0 : i32
    return %arg0, %c0_i32, %c0_i32_0 : i32, i32, i32
  }
  func.func @transform_3(%arg0: i32) -> (i32, i32, i32) {
    %c0_i32 = arith.constant 0 : i32
    %c0_i32_0 = arith.constant 0 : i32
    %c0_i32_1 = arith.constant 0 : i32
    return %arg0, %c0_i32, %c0_i32_0 : i32, i32, i32
  }
}

</mosaic_0001>

<llo_original>
// kernel: vit_raw_embedding.1
$region0: #{vit_raw_embedding.1}
  #allocation0 [shape = 'u32[]', space=smem, size = 0x4, offset = 0x4, fixed_abs, tag = 'smem constant byte address 0x4 - core index']
  #allocation1 [shape = 'u32[144,128]{1,0:T(1,128)}', space=vmem, size = 0x12000, scoped, tag = 'internal scratch']
  %s0 = inlined_call_operand.vmem [shape: f32[2,4,128], index: 0, kind: input, shape index: {}]
  %s1 = inlined_call_operand.vmem [shape: f32[2,1,128], index: 1, kind: input, shape index: {}]
  %s2 = inlined_call_operand.vmem [shape: f32[2,5,128], index: 2, kind: input, shape index: {}]
  %s3 = inlined_call_operand.vmem [shape: f32[2,5,128], index: 3, kind: output, shape index: {}]
  %s4 = sld [smem:[#allocation0]]
  $region45: #{vit_raw_embedding.1} parent=0
    _
  %s6 = ssub.s32 1, %s4
  %s7 = scalar_select 0, %s6, %s4
  loop: start=0, step=1, limit=4
  $region2: #{vit_raw_embedding.1} parent=0 // loop_pre_header
    _
  $region3: #{vit_raw_embedding.1} parent=0 // loop_header
    %s9 = sphi 0, %s13
    %p10 = scmp.ge.s32.totalorder %s9, 4
    %s19 = sphi 0, %s21
    %s22 = sphi 0, %s19
    %s23 = sphi 0, %s22
    %s39 = sphi 0, %s23
    %s45 = sphi 0, %s47
    %s48 = sphi 0, %s45
    %s49 = sphi 0, %s48
    %s65 = sphi 0, %s49
    %s71 = sphi 0, %s73
    %s74 = sphi 0, %s71
    %s75 = sphi 0, %s74
    %s91 = sphi 0, %s75
    %s97 = sphi 0, %s99
    %s100 = sphi 0, %s97
    %s101 = sphi 0, %s100
    %s117 = sphi 0, %s101
  $region4: #{vit_raw_embedding.1} parent=0 // loop_header_branch
    %12 = sbr.rel (%p10) target = $region8
  $region5: #{vit_raw_embedding.1} parent=0 // loop_body
    %s14 = ssub.s32 %s9, 1
    %s15 = ssub.s32 %s9, 2
    %s16 = sadd.s32 %s9, 1
    %s17 = ssub.s32 %s9, %s16
    %p18 = scmp.eq.s32.totalorder %s17, 0
    %s20 = sadd.s32 %s19, 1
    %s21 = scalar_select %p18, %s19, %s20
    %p24 = pneg %p18
    %p25 = scmp.eq.s32.totalorder %s9, 1
    %p26 = por %p24, %p25
    %p27 = scmp.ne.s32.totalorder %s19, %s22
    %p28 = scmp.eq.s32.totalorder %s9, 0
    %p29 = por %p27, %p28
    %p30 = scmp.ne.s32.totalorder %s19, %s22
    %p31 = scmp.eq.s32.totalorder %s14, 1
    %p32 = por %p30, %p31
    %p33 = scmp.ne.s32.totalorder %s22, %s23
    %p34 = scmp.eq.s32.totalorder %s14, 0
    %p35 = por %p33, %p34
    %p36 = scmp.ne.s32.totalorder %s22, %s23
    %p37 = scmp.eq.s32.totalorder %s15, 1
    %p38 = por %p36, %p37
    %p40 = scmp.ne.s32.totalorder %s23, %s39
    %p41 = scmp.eq.s32.totalorder %s15, 0
    %p42 = por %p40, %p41
    %s43 = ssub.s32 %s9, %s16
    %p44 = scmp.eq.s32.totalorder %s43, 0
    %s46 = sadd.s32 %s45, 1
    %s47 = scalar_select %p44, %s45, %s46
    %p50 = pneg %p44
    %p51 = scmp.eq.s32.totalorder %s9, 1
    %p52 = por %p50, %p51
    %p53 = scmp.ne.s32.totalorder %s45, %s48
    %p54 = scmp.eq.s32.totalorder %s9, 0
    %p55 = por %p53, %p54
    %p56 = scmp.ne.s32.totalorder %s45, %s48
    %p57 = scmp.eq.s32.totalorder %s14, 1
    %p58 = por %p56, %p57
    %p59 = scmp.ne.s32.totalorder %s48, %s49
    %p60 = scmp.eq.s32.totalorder %s14, 0
    %p61 = por %p59, %p60
    %p62 = scmp.ne.s32.totalorder %s48, %s49
    %p63 = scmp.eq.s32.totalorder %s15, 1
    %p64 = por %p62, %p63
    %p66 = scmp.ne.s32.totalorder %s49, %s65
    %p67 = scmp.eq.s32.totalorder %s15, 0
    %p68 = por %p66, %p67
    %s69 = ssub.s32 %s9, %s16
    %p70 = scmp.eq.s32.totalorder %s69, 0
    %s72 = sadd.s32 %s71, 1
    %s73 = scalar_select %p70, %s71, %s72
    %p76 = pneg %p70
    %p77 = scmp.eq.s32.totalorder %s9, 1
    %p78 = por %p76, %p77
    %p79 = scmp.ne.s32.totalorder %s71, %s74
    %p80 = scmp.eq.s32.totalorder %s9, 0
    %p81 = por %p79, %p80
    %p82 = scmp.ne.s32.totalorder %s71, %s74
    %p83 = scmp.eq.s32.totalorder %s14, 1
    %p84 = por %p82, %p83
    %p85 = scmp.ne.s32.totalorder %s74, %s75
    %p86 = scmp.eq.s32.totalorder %s14, 0
    %p87 = por %p85, %p86
    %p88 = scmp.ne.s32.totalorder %s74, %s75
    %p89 = scmp.eq.s32.totalorder %s15, 1
    %p90 = por %p88, %p89
    %p92 = scmp.ne.s32.totalorder %s75, %s91
    %p93 = scmp.eq.s32.totalorder %s15, 0
    %p94 = por %p92, %p93
    %s95 = ssub.s32 %s9, %s16
    %p96 = scmp.eq.s32.totalorder %s95, 0
    %s98 = sadd.s32 %s97, 1
    %s99 = scalar_select %p96, %s97, %s98
    %p102 = pneg %p96
    %p103 = scmp.eq.s32.totalorder %s9, 1
    %p104 = por %p102, %p103
    %p105 = scmp.ne.s32.totalorder %s97, %s100
    %p106 = scmp.eq.s32.totalorder %s9, 0
    %p107 = por %p105, %p106
    %p108 = scmp.ne.s32.totalorder %s97, %s100
    %p109 = scmp.eq.s32.totalorder %s14, 1
    %p110 = por %p108, %p109
    %p111 = scmp.ne.s32.totalorder %s100, %s101
    %p112 = scmp.eq.s32.totalorder %s14, 0
    %p113 = por %p111, %p112
    %p114 = scmp.ne.s32.totalorder %s100, %s101
    %p115 = scmp.eq.s32.totalorder %s15, 1
    %p116 = por %p114, %p115
    %p118 = scmp.ne.s32.totalorder %s101, %s117
    %p119 = scmp.eq.s32.totalorder %s15, 0
    %p120 = por %p118, %p119
    %p121 = scmp.le.s32.totalorder 1, %s9
    %p122 = scmp.lt.s32.totalorder %s9, 3
    %p123 = pnand %p121, %p122
    %p124 = pneg %p123
    // Predicated region
    $region9: #{vit_raw_embedding.1} parent=5 // pred_check
      _
    $region10: #{vit_raw_embedding.1} parent=5 // pred_check_branch
      %126 = sbr.rel (%p123) target = $region12
    $region11: #{vit_raw_embedding.1} parent=5 // pred_region
      %s127 = ssub.s32 %s9, 1
    $region12: #{vit_raw_embedding.1} parent=5 // pred_fallthru
      _
    %p128 = scmp.lt.s32.totalorder %s9, 2
    // Predicated region
    $region13: #{vit_raw_embedding.1} parent=5 // pred_check
      %p129 = pneg %p128
    $region14: #{vit_raw_embedding.1} parent=5 // pred_check_branch
      %131 = sbr.rel (%p129) target = $region16
    $region15: #{vit_raw_embedding.1} parent=5 // pred_region
      // Predicated region
      $region17: #{vit_raw_embedding.1} parent=15 // pred_check
        %p132 = pneg %p29
      $region18: #{vit_raw_embedding.1} parent=15 // pred_check_branch
        %134 = sbr.rel (%p132) target = $region20
      $region19: #{vit_raw_embedding.1} parent=15 // pred_region
        %p135 = scmp.lt.s32.totalorder %s9, 1
        %s136 = scalar_select %p135, %s9, 1
        %s137 = smul.addr %s136, 4
        %s138 = scalar_lea.vmem %s0, %s137
      $region20: #{vit_raw_embedding.1} parent=15 // pred_fallthru
        _
      // Predicated region
      $region21: #{vit_raw_embedding.1} parent=15 // pred_check
        %p139 = pneg %p55
      $region22: #{vit_raw_embedding.1} parent=15 // pred_check_branch
        %141 = sbr.rel (%p139) target = $region24
      $region23: #{vit_raw_embedding.1} parent=15 // pred_region
        %p142 = scmp.lt.s32.totalorder %s9, 1
        %s143 = scalar_select %p142, %s9, 1
        %s144 = scalar_lea.vmem %s1, %s143
      $region24: #{vit_raw_embedding.1} parent=15 // pred_fallthru
        _
      // Predicated region
      $region25: #{vit_raw_embedding.1} parent=15 // pred_check
        %p145 = pneg %p81
      $region26: #{vit_raw_embedding.1} parent=15 // pred_check_branch
        %147 = sbr.rel (%p145) target = $region28
      $region27: #{vit_raw_embedding.1} parent=15 // pred_region
        %p148 = scmp.lt.s32.totalorder %s9, 1
        %s149 = scalar_select %p148, %s9, 1
        %s150 = smul.addr %s149, 8
        %s151 = scalar_lea.vmem %s2, %s150
      $region28: #{vit_raw_embedding.1} parent=15 // pred_fallthru
        _
    $region16: #{vit_raw_embedding.1} parent=5 // pred_fallthru
      _
    %p152 = scmp.le.s32.totalorder 1, %s9
    %p153 = scmp.lt.s32.totalorder %s9, 3
    %p154 = pnand %p152, %p153
    %p155 = pneg %p154
    // Predicated region
    $region29: #{vit_raw_embedding.1} parent=5 // pred_check
      _
    $region30: #{vit_raw_embedding.1} parent=5 // pred_check_branch
      %157 = sbr.rel (%p154) target = $region32
    $region31: #{vit_raw_embedding.1} parent=5 // pred_region
      %s158 = ssub.s32 %s9, 1
      %p159 = scmp.lt.s32.totalorder %s14, 1
      %s160 = scalar_select %p159, %s14, 1
      %s161 = smul.addr %s160, 4
      %s162 = scalar_lea.vmem %s0, %s161
      %p163 = pneg %p35
      %p164 = pneg %p32
      %p165 = scmp.lt.s32.totalorder %s14, 1
      %s166 = scalar_select %p165, %s14, 1
      %s167 = scalar_lea.vmem %s1, %s166
      %p168 = pneg %p61
      %p169 = pneg %p58
      %p170 = scmp.lt.s32.totalorder %s14, 1
      %s171 = scalar_select %p170, %s14, 1
      %s172 = smul.addr %s171, 8
      %s173 = scalar_lea.vmem %s2, %s172
      %p174 = pneg %p87
      %p175 = pneg %p84
      %p176 = pneg %p113
      %p177 = pneg %p110
      %p178 = scmp.lt.s32.totalorder %s14, 1
      %s179 = scalar_select %p178, %s14, 1
      %s180 = smul.addr %s179, 8
      %s181 = scalar_lea.vmem %s3, %s180
      %p182 = scmp.lt.s32.totalorder %s14, 1
      %s183 = scalar_select %p182, %s14, 1
      %s184 = smul.addr %s183, 4
      %s185 = scalar_lea.vmem %s0, %s184
      %p186 = scmp.lt.s32.totalorder %s14, 1
      %s187 = scalar_select %p186, %s14, 1
      %s188 = scalar_lea.vmem %s1, %s187
      %p189 = scmp.lt.s32.totalorder %s14, 1
      %s190 = scalar_select %p189, %s14, 1
      %s191 = smul.addr %s190, 8
      %s192 = scalar_lea.vmem %s2, %s191
      %p193 = scmp.lt.s32.totalorder %s14, 1
      %s194 = scalar_select %p193, %s14, 1
      %s195 = smul.addr %s194, 8
      %s196 = scalar_lea.vmem %s3, %s195
      %v197 = vld [vmem:[%s188] sm:$0x1]
      %v198 = vld [vmem:[%s192] sm:$0x1]
      %v199 = vadd.f32 %v197, %v198
      %200 = vst [vmem:[%s196] sm:$0x1] %v199
      %v201 = vld [vmem:[%s185] sm:$0xf]
      %v202 = vld [vmem:[%s192 + $0x1] sm:$0xf]
      %v203 = vadd.f32 %v201, %v202
      %204 = vst [vmem:[%s196 + $0x1] sm:$0xf] %v203
      %p205 = scmp.lt.s32.totalorder %s14, 1
      %s206 = scalar_select %p205, %s14, 1
      %s207 = smul.addr %s206, 8
      %s208 = scalar_lea.vmem %s3, %s207
      // Predicated region
      $region33: #{vit_raw_embedding.1} parent=31 // pred_check
        %p209 = pneg %p110
      $region34: #{vit_raw_embedding.1} parent=31 // pred_check_branch
        %211 = sbr.rel (%p209) target = $region36
      $region35: #{vit_raw_embedding.1} parent=31 // pred_region
        _
      $region36: #{vit_raw_embedding.1} parent=31 // pred_fallthru
        _
    $region32: #{vit_raw_embedding.1} parent=5 // pred_fallthru
      _
    %p212 = scmp.le.s32.totalorder 2, %s9
    // Predicated region
    $region37: #{vit_raw_embedding.1} parent=5 // pred_check
      %p213 = pneg %p212
    $region38: #{vit_raw_embedding.1} parent=5 // pred_check_branch
      %215 = sbr.rel (%p213) target = $region40
    $region39: #{vit_raw_embedding.1} parent=5 // pred_region
      %s216 = ssub.s32 %s9, 2
      // Predicated region
      $region41: #{vit_raw_embedding.1} parent=39 // pred_check
        %p217 = pneg %p116
      $region42: #{vit_raw_embedding.1} parent=39 // pred_check_branch
        %219 = sbr.rel (%p217) target = $region44
      $region43: #{vit_raw_embedding.1} parent=39 // pred_region
        %p220 = scmp.lt.s32.totalorder %s15, 1
        %s221 = scalar_select %p220, %s15, 1
        %s222 = smul.addr %s221, 8
        %s223 = scalar_lea.vmem %s3, %s222
      $region44: #{vit_raw_embedding.1} parent=39 // pred_fallthru
        _
    $region40: #{vit_raw_embedding.1} parent=5 // pred_fallthru
      _
  $region6: #{vit_raw_embedding.1} parent=0 // loop_footer
    %s13 = sadd.s32 1, %s9
  $region7: #{vit_raw_embedding.1} parent=0 // loop_footer_branch
    %8 = sbr.rel target = $region3
  $region8: #{vit_raw_embedding.1} parent=0 // loop_exit
    _

</llo_original>
